<compile_context>
chip_gen: v7x
topology: tpu7x:2x2x1
jax: 0.10.0
libtpu: 0.0.40
codegen_flags: <defaults>
</compile_context>

<pallas_src>
import functools

import jax
import jax.numpy as jnp
from jax.experimental import pallas as pl
from jax.experimental.pallas import tpu as pltpu

EPS = 0.0        # GINConv default eps (train_eps=False)
_LANE = 128      # vreg lane width (last dim)
_SUB_BF16 = 16   # bf16 sublane quantum (second-to-last dim)


def _ceil_to(n, m):
    return ((n + m - 1) // m) * m


def _gin2_fused_kernel(adj_ref, x_ref, w_ref, b_ref, out_ref):
    """Fused 2-layer GIN.  adj already contains the (1+eps)*I self term, so each
    layer is  h = ReLU((A' @ h) @ W_a + b_a) @ W_b + b_b.
    MXU operands are bf16; accumulation and elementwise math are f32."""
    adj = adj_ref[...]                                              # bf16 [Np, Np]

    # ---- conv1: MLP((1+eps)*x + sum_j x_j) ----
    h = jnp.dot(adj, x_ref[...], preferred_element_type=jnp.float32)
    h = jnp.dot(h.astype(jnp.bfloat16), w_ref[0],
                preferred_element_type=jnp.float32) + b_ref[0]
    h = jnp.maximum(h, 0.0)
    h = jnp.dot(h.astype(jnp.bfloat16), w_ref[1],
                preferred_element_type=jnp.float32) + b_ref[1]

    # ---- conv2 ----
    h = jnp.dot(adj, h.astype(jnp.bfloat16), preferred_element_type=jnp.float32)
    h = jnp.dot(h.astype(jnp.bfloat16), w_ref[2],
                preferred_element_type=jnp.float32) + b_ref[2]
    h = jnp.maximum(h, 0.0)
    h = jnp.dot(h.astype(jnp.bfloat16), w_ref[3],
                preferred_element_type=jnp.float32) + b_ref[3]

    out_ref[...] = h.astype(out_ref.dtype)


def build_gin_adjacency(edge_index, num_nodes, eps=EPS):
    """A[dst, src] = 1 per edge, symmetrized (undirected graph), with the GIN
    (1+eps)*I self term folded in so aggregation + self term is one matmul."""
    src = edge_index[0]
    dst = edge_index[1]
    adj = jnp.zeros((num_nodes, num_nodes), jnp.float32)
    adj = adj.at[dst, src].set(1.0)
    adj = adj.at[src, dst].set(1.0)
    return adj + (1.0 + eps) * jnp.eye(num_nodes, dtype=jnp.float32)


def prepare_gin_constants(adj, params):
    """One-time padding + casting of constant operands (hoisted out of the
    per-call path).  Returns (adj_p, w_stack, b_stack)."""
    n = adj.shape[0]
    in_feats = params["l1_w1"].shape[0]
    hid = params["l1_w2"].shape[1]
    out_feats = params["l2_w2"].shape[1]

    np_ = _ceil_to(n, _SUB_BF16)                       # node dim -> bf16 sublane quantum
    kp = max(_ceil_to(in_feats, _LANE), _ceil_to(hid, _LANE),
             _ceil_to(out_feats, _LANE))               # shared lane-dense width

    def pad2(a, rows, cols, dtype):
        r, c = a.shape
        return jnp.pad(a, ((0, rows - r), (0, cols - c))).astype(dtype)

    adj_p = pad2(adj, np_, np_, jnp.bfloat16)          # {0,1,1+eps} -> exact in bf16

    # Stacked weight slab (4, kp, kp) bf16: one DMA for all four linears.
    # Zero padding keeps the math exact (padded rows/cols contribute 0).
    w_stack = jnp.stack([
        pad2(params["l1_w1"], kp, kp, jnp.bfloat16),
        pad2(params["l1_w2"], kp, kp, jnp.bfloat16),
        pad2(params["l2_w1"], kp, kp, jnp.bfloat16),
        pad2(params["l2_w2"], kp, kp, jnp.bfloat16),
    ])
    # Stacked bias slab (4, 1, kp) f32: one DMA for all four biases.
    def pad_b(b):
        b = b.reshape(1, -1)
        return jnp.pad(b, ((0, 0), (0, kp - b.shape[1]))).astype(jnp.float32)

    b_stack = jnp.stack([pad_b(params["l1_b1"]), pad_b(params["l1_b2"]),
                         pad_b(params["l2_b1"]), pad_b(params["l2_b2"])])
    return adj_p, w_stack, b_stack


@functools.partial(jax.jit, static_argnames=("out_feats",))
def gin_model(x, adj_p, w_stack, b_stack, *, out_feats):
    """Forward pass: only x is padded/cast per call; everything else is a
    pre-padded constant."""
    n, f_in = x.shape
    np_ = adj_p.shape[0]
    kp = w_stack.shape[-1]

    x_p = jnp.pad(x, ((0, np_ - n), (0, kp - f_in))).astype(jnp.bfloat16)

    vmem = pl.BlockSpec(memory_space=pltpu.MemorySpace.VMEM)
    flops = 2 * (2 * np_ * np_ * kp + 4 * np_ * kp * kp)
    bytes_accessed = ((adj_p.size + x_p.size + w_stack.size) * 2
                      + b_stack.size * 4 + np_ * kp * 4)

    out_padded = pl.pallas_call(
        _gin2_fused_kernel,
        out_shape=jax.ShapeDtypeStruct((np_, kp), jnp.float32),
        in_specs=[vmem, vmem, vmem, vmem],
        out_specs=vmem,
        cost_estimate=pl.CostEstimate(flops=flops, transcendentals=0,
                                      bytes_accessed=bytes_accessed),
    )(adj_p, x_p, w_stack, b_stack)

    # Padded node rows / feature cols never leak into real rows (their adjacency
    # columns and weight rows are zero); slice them off.
    return out_padded[:n, :out_feats]


def gin_reference(adj, x, params):
    """Pure-JAX f32 reference (adj already contains the (1+eps)*I term)."""
    h = adj @ x
    h = jnp.maximum(h @ params["l1_w1"] + params["l1_b1"], 0.0)
    h = h @ params["l1_w2"] + params["l1_b2"]
    h = adj @ h
    h = jnp.maximum(h @ params["l2_w1"] + params["l2_b1"], 0.0)
    h = h @ params["l2_w2"] + params["l2_b2"]
    return h


def init_params(key, in_feats, hidden_feats, out_feats):
    ks = jax.random.split(key, 8)
    scale = 0.1
    return {
        # conv1 MLP: Linear(in, hidden) -> ReLU -> Linear(hidden, hidden)
        "l1_w1": scale * jax.random.normal(ks[0], (in_feats, hidden_feats), jnp.float32),
        "l1_b1": scale * jax.random.normal(ks[1], (1, hidden_feats), jnp.float32),
        "l1_w2": scale * jax.random.normal(ks[2], (hidden_feats, hidden_feats), jnp.float32),
        "l1_b2": scale * jax.random.normal(ks[3], (1, hidden_feats), jnp.float32),
        # conv2 MLP: Linear(hidden, out) -> ReLU -> Linear(out, out)
        "l2_w1": scale * jax.random.normal(ks[4], (hidden_feats, out_feats), jnp.float32),
        "l2_b1": scale * jax.random.normal(ks[5], (1, out_feats), jnp.float32),
        "l2_w2": scale * jax.random.normal(ks[6], (out_feats, out_feats), jnp.float32),
        "l2_b2": scale * jax.random.normal(ks[7], (1, out_feats), jnp.float32),
    }


if __name__ == "__main__":
    key = jax.random.PRNGKey(0)
    k_x, k_p, k_e = jax.random.split(key, 3)

    num_nodes = 16
    in_feats, hidden_feats, out_feats = 8, 32, 16

    # synthetic node features (ms_features equivalent)
    x = jax.random.normal(k_x, (num_nodes, in_feats), jnp.float32)

    # synthetic undirected edge list (ring + a few chords), deterministic
    src = jnp.arange(num_nodes, dtype=jnp.int32)
    dst = (src + 1) % num_nodes
    extra_src = jnp.array([0, 3, 5, 7], dtype=jnp.int32)
    extra_dst = jnp.array([8, 11, 13, 2], dtype=jnp.int32)
    edge_index = jnp.stack(
        [jnp.concatenate([src, extra_src]), jnp.concatenate([dst, extra_dst])], axis=0
    )
    # edge weights exist in the original pipeline but GINConv does not use them
    edge_weight = jax.random.uniform(k_e, (edge_index.shape[1],), jnp.float32)  # noqa: F841
    # TODO(synk): edge_attr is unused by PyG GINConv's forward; kept only for parity.

    adj = build_gin_adjacency(edge_index, num_nodes, eps=EPS)
    params = init_params(k_p, in_feats, hidden_feats, out_feats)

    # One-time preparation (off the per-call path): pad + cast constants.
    adj_p, w_stack, b_stack = jax.block_until_ready(
        prepare_gin_constants(adj, params))

    out = gin_model(x, adj_p, w_stack, b_stack, out_feats=out_feats)
    out = jax.block_until_ready(out)

    ref = gin_reference(adj, x, params)
    assert out.shape == (num_nodes, out_feats)
    assert jnp.all(jnp.isfinite(out))
    assert jnp.allclose(out, ref, atol=1e-1, rtol=1e-1), float(jnp.max(jnp.abs(out - ref)))
    print("KERNEL_OK")
</pallas_src>

<mosaic_0001>
module attributes {stable_mosaic.version = 11 : i64} {
  func.func @_gin2_fused_kernel(%arg0: memref<16x16xbf16, #tpu.memory_space<vmem>>, %arg1: memref<16x128xbf16, #tpu.memory_space<vmem>>, %arg2: memref<4x128x128xbf16, #tpu.memory_space<vmem>>, %arg3: memref<4x1x128xf32, #tpu.memory_space<vmem>>, %arg4: memref<16x128xf32, #tpu.memory_space<vmem>>) attributes {dimension_semantics = [], scalar_prefetch = 0 : i64, scratch_operands = 0 : i64, tpu.core_type = #tpu.core_type<tc>} {
    %c0 = arith.constant 0 : index
    %c0_0 = arith.constant 0 : index
    %0 = vector.load %arg0[%c0, %c0_0] : memref<16x16xbf16, #tpu.memory_space<vmem>>, vector<16x16xbf16>
    %c0_1 = arith.constant 0 : index
    %c0_2 = arith.constant 0 : index
    %1 = vector.load %arg1[%c0_1, %c0_2] : memref<16x128xbf16, #tpu.memory_space<vmem>>, vector<16x128xbf16>
    %cst = arith.constant dense<0.000000e+00> : vector<16x128xf32>
    %2 = tpu.matmul %0, %1, %cst {dimension_numbers = #tpu.dot_dimension_numbers<[1], [0], [0], [1], [0, 0, 1, 1], [], []>} : vector<16x16xbf16>, vector<16x128xbf16>, vector<16x128xf32> -> vector<16x128xf32>
    %3 = arith.truncf %2 : vector<16x128xf32> to vector<16x128xbf16>
    %c0_3 = arith.constant 0 : index
    %c0_4 = arith.constant 0 : index
    %c0_5 = arith.constant 0 : index
    %4 = vector.load %arg2[%c0_3, %c0_4, %c0_5] : memref<4x128x128xbf16, #tpu.memory_space<vmem>>, vector<1x128x128xbf16>
    %5 = vector.shape_cast %4 : vector<1x128x128xbf16> to vector<128x128xbf16>
    %cst_6 = arith.constant dense<0.000000e+00> : vector<16x128xf32>
    %6 = tpu.matmul %3, %5, %cst_6 {dimension_numbers = #tpu.dot_dimension_numbers<[1], [0], [0], [1], [0, 0, 1, 1], [], []>} : vector<16x128xbf16>, vector<128x128xbf16>, vector<16x128xf32> -> vector<16x128xf32>
    %c0_7 = arith.constant 0 : index
    %c0_8 = arith.constant 0 : index
    %c0_9 = arith.constant 0 : index
    %7 = vector.load %arg3[%c0_7, %c0_8, %c0_9] : memref<4x1x128xf32, #tpu.memory_space<vmem>>, vector<1x1x128xf32>
    %8 = vector.shape_cast %7 : vector<1x1x128xf32> to vector<1x128xf32>
    %9 = vector.broadcast %8 : vector<1x128xf32> to vector<16x128xf32>
    %10 = arith.addf %6, %9 : vector<16x128xf32>
    %cst_10 = arith.constant 0.000000e+00 : f32
    %11 = vector.broadcast %cst_10 : f32 to vector<16x128xf32>
    %12 = arith.maximumf %10, %11 : vector<16x128xf32>
    %13 = arith.truncf %12 : vector<16x128xf32> to vector<16x128xbf16>
    %c1 = arith.constant 1 : index
    %c0_11 = arith.constant 0 : index
    %c0_12 = arith.constant 0 : index
    %14 = vector.load %arg2[%c1, %c0_11, %c0_12] : memref<4x128x128xbf16, #tpu.memory_space<vmem>>, vector<1x128x128xbf16>
    %15 = vector.shape_cast %14 : vector<1x128x128xbf16> to vector<128x128xbf16>
    %cst_13 = arith.constant dense<0.000000e+00> : vector<16x128xf32>
    %16 = tpu.matmul %13, %15, %cst_13 {dimension_numbers = #tpu.dot_dimension_numbers<[1], [0], [0], [1], [0, 0, 1, 1], [], []>} : vector<16x128xbf16>, vector<128x128xbf16>, vector<16x128xf32> -> vector<16x128xf32>
    %c1_14 = arith.constant 1 : index
    %c0_15 = arith.constant 0 : index
    %c0_16 = arith.constant 0 : index
    %17 = vector.load %arg3[%c1_14, %c0_15, %c0_16] : memref<4x1x128xf32, #tpu.memory_space<vmem>>, vector<1x1x128xf32>
    %18 = vector.shape_cast %17 : vector<1x1x128xf32> to vector<1x128xf32>
    %19 = vector.broadcast %18 : vector<1x128xf32> to vector<16x128xf32>
    %20 = arith.addf %16, %19 : vector<16x128xf32>
    %21 = arith.truncf %20 : vector<16x128xf32> to vector<16x128xbf16>
    %cst_17 = arith.constant dense<0.000000e+00> : vector<16x128xf32>
    %22 = tpu.matmul %0, %21, %cst_17 {dimension_numbers = #tpu.dot_dimension_numbers<[1], [0], [0], [1], [0, 0, 1, 1], [], []>} : vector<16x16xbf16>, vector<16x128xbf16>, vector<16x128xf32> -> vector<16x128xf32>
    %23 = arith.truncf %22 : vector<16x128xf32> to vector<16x128xbf16>
    %c2 = arith.constant 2 : index
    %c0_18 = arith.constant 0 : index
    %c0_19 = arith.constant 0 : index
    %24 = vector.load %arg2[%c2, %c0_18, %c0_19] : memref<4x128x128xbf16, #tpu.memory_space<vmem>>, vector<1x128x128xbf16>
    %25 = vector.shape_cast %24 : vector<1x128x128xbf16> to vector<128x128xbf16>
    %cst_20 = arith.constant dense<0.000000e+00> : vector<16x128xf32>
    %26 = tpu.matmul %23, %25, %cst_20 {dimension_numbers = #tpu.dot_dimension_numbers<[1], [0], [0], [1], [0, 0, 1, 1], [], []>} : vector<16x128xbf16>, vector<128x128xbf16>, vector<16x128xf32> -> vector<16x128xf32>
    %c2_21 = arith.constant 2 : index
    %c0_22 = arith.constant 0 : index
    %c0_23 = arith.constant 0 : index
    %27 = vector.load %arg3[%c2_21, %c0_22, %c0_23] : memref<4x1x128xf32, #tpu.memory_space<vmem>>, vector<1x1x128xf32>
    %28 = vector.shape_cast %27 : vector<1x1x128xf32> to vector<1x128xf32>
    %29 = vector.broadcast %28 : vector<1x128xf32> to vector<16x128xf32>
    %30 = arith.addf %26, %29 : vector<16x128xf32>
    %cst_24 = arith.constant 0.000000e+00 : f32
    %31 = vector.broadcast %cst_24 : f32 to vector<16x128xf32>
    %32 = arith.maximumf %30, %31 : vector<16x128xf32>
    %33 = arith.truncf %32 : vector<16x128xf32> to vector<16x128xbf16>
    %c3 = arith.constant 3 : index
    %c0_25 = arith.constant 0 : index
    %c0_26 = arith.constant 0 : index
    %34 = vector.load %arg2[%c3, %c0_25, %c0_26] : memref<4x128x128xbf16, #tpu.memory_space<vmem>>, vector<1x128x128xbf16>
    %35 = vector.shape_cast %34 : vector<1x128x128xbf16> to vector<128x128xbf16>
    %cst_27 = arith.constant dense<0.000000e+00> : vector<16x128xf32>
    %36 = tpu.matmul %33, %35, %cst_27 {dimension_numbers = #tpu.dot_dimension_numbers<[1], [0], [0], [1], [0, 0, 1, 1], [], []>} : vector<16x128xbf16>, vector<128x128xbf16>, vector<16x128xf32> -> vector<16x128xf32>
    %c3_28 = arith.constant 3 : index
    %c0_29 = arith.constant 0 : index
    %c0_30 = arith.constant 0 : index
    %37 = vector.load %arg3[%c3_28, %c0_29, %c0_30] : memref<4x1x128xf32, #tpu.memory_space<vmem>>, vector<1x1x128xf32>
    %38 = vector.shape_cast %37 : vector<1x1x128xf32> to vector<1x128xf32>
    %39 = vector.broadcast %38 : vector<1x128xf32> to vector<16x128xf32>
    %40 = arith.addf %36, %39 : vector<16x128xf32>
    %c0_31 = arith.constant 0 : index
    %c0_32 = arith.constant 0 : index
    %41 = vector.load %arg4[%c0_31, %c0_32] : memref<16x128xf32, #tpu.memory_space<vmem>>, vector<16x128xf32>
    tpu.vector_store %arg4[%c0_31, %c0_32], %40 {strides = array<i32>} : memref<16x128xf32, #tpu.memory_space<vmem>>, vector<16x128xf32>,
    return
  }
}

</mosaic_0001>

<llo_original>
// kernel: gin_model.1
$region0: #{gin_model.1}
  #allocation0 [shape = 'u32[]', space=smem, size = 0x4, offset = 0x4, fixed_abs, tag = 'smem constant byte address 0x4 - core index']
  #allocation1 [shape = 'u32[144,128]{1,0:T(1,128)}', space=vmem, size = 0x12000, scoped, tag = 'internal scratch']
  %s0 = inlined_call_operand.vmem [shape: bf16[16,16], index: 0, kind: input, shape index: {}]
  %s1 = inlined_call_operand.vmem [shape: bf16[16,128], index: 1, kind: input, shape index: {}]
  %s2 = inlined_call_operand.hbm [shape: bf16[4,128,128], index: 2, kind: input, shape index: {}]
  %s3 = inlined_call_operand.vmem [shape: f32[4,1,128], index: 3, kind: input, shape index: {}]
  %s4 = inlined_call_operand.hbm [shape: f32[16,128], index: 4, kind: output, shape index: {}]
  %s5 = sld [smem:[#allocation0]]
  $region30: #{gin_model.1} parent=0
    _
  %s7 = ssub.s32 1, %s5
  %s8 = scalar_select 0, %s7, %s5
  $region1: #{gin_model.1} parent=0
    #allocation2 [shape = 'u8[131072]{0}', space=vmem, size = 0x20000, scoped, tag = 'input window, operand 2, single buffered']
    #allocation3 [shape = 's32[1]{0}', space=sflag, size = 0x4, scoped, tag = 'scoped memory for gin_model.1']
    #allocation4 [shape = 's32[1]{0}', space=sflag, size = 0x4, scoped, tag = 'scoped memory for gin_model.1']
    #allocation5 [shape = 'u8[8192]{0}', space=vmem, size = 0x2000, scoped, tag = 'output window, operand 0, single buffered']
    %9 = vsyncpa [#allocation3], 0
    %10 = vsyncpa [#allocation4], 0
    // Predicated region
    $region2: #{gin_model.1} parent=1 // pred_check
      _
    $region3: #{gin_model.1} parent=1 // pred_check_branch
      %12 = sbr.rel (0) target = $region5
    $region4: #{gin_model.1} parent=1 // pred_region
      _
    $region5: #{gin_model.1} parent=1 // pred_fallthru
      _
    // Predicated region
    $region6: #{gin_model.1} parent=1 // pred_check
      _
    $region7: #{gin_model.1} parent=1 // pred_check_branch
      %14 = sbr.rel (0) target = $region9
    $region8: #{gin_model.1} parent=1 // pred_region
      _
    $region9: #{gin_model.1} parent=1 // pred_fallthru
      _
    // Predicated region
    $region10: #{gin_model.1} parent=1 // pred_check
      _
    $region11: #{gin_model.1} parent=1 // pred_check_branch
      %16 = sbr.rel (0) target = $region13
    $region12: #{gin_model.1} parent=1 // pred_region
      %s18 = ssub.s32 4096, 4096
      %19 = vsyncadd [#allocation3], %s18
      %s20 = sshll.u32 [#allocation2], 4
      %s21 = int_to_ptr.vmem [resolvable:$true] %s20
      %26 = dma.hbm_to_vmem [thread:$0]  %s2, 4096, %s21, [#allocation3], 64, 64, 4
    $region13: #{gin_model.1} parent=1 // pred_fallthru
      _
    // Predicated region
    $region14: #{gin_model.1} parent=1 // pred_check
      _
    $region15: #{gin_model.1} parent=1 // pred_check_branch
      %28 = sbr.rel (0) target = $region17
    $region16: #{gin_model.1} parent=1 // pred_region
      _
    $region17: #{gin_model.1} parent=1 // pred_fallthru
      _
    // Predicated region
    $region18: #{gin_model.1} parent=1 // pred_check
      _
    $region19: #{gin_model.1} parent=1 // pred_check_branch
      %30 = sbr.rel (0) target = $region21
    $region20: #{gin_model.1} parent=1 // pred_region
      %31 = dma.done [#allocation3], 4096
    $region21: #{gin_model.1} parent=1 // pred_fallthru
      _
    %v33 = vld [vmem:[%s0] sm:$0xf]
    %v34 = vld [vmem:[%s0 + $0x4] sm:$0xf]
    %v35 = vld [vmem:[%s1] sm:$0xf]
    %v36 = vld [vmem:[%s1 + $0x4] sm:$0xf]
    %v39 = vunpack.c.l.b16 %v33
    %v40 = vunpack.c.l.b16 %v34
    %v41 = vpack.c.b16 %v40, %v39
    %v44 = vunpack.c.l.b16 %v35
    %v45 = vunpack.c.l.b16 %v36
    %v46 = vpack.c.b16 %v45, %v44
    %vm48 = vcmask 130048
    %v50 = vsel %vm48, %v41, 0
    %52 = vmatprep.subr.bf16.mxu0 0
    %53 = vmatpush1.bf16.msra.mxu0 %v46
    %54 = vmatprep.subr.bf16.mxu0 0
    %55 = vmatpush1.bf16.msra.mxu0 0
    %56 = vmatprep.subr.bf16.mxu0 0
    %57 = vmatpush1.bf16.msra.mxu0 0
    %58 = vmatprep.subr.bf16.mxu0 0
    %59 = vmatpush1.bf16.msra.mxu0 0
    %60 = vmatprep.subr.bf16.mxu0 0
    %61 = vmatpush1.bf16.msra.mxu0 0
    %62 = vmatprep.subr.bf16.mxu0 0
    %63 = vmatpush1.bf16.msra.mxu0 0
    %64 = vmatprep.subr.bf16.mxu0 0
    %65 = vmatpush1.bf16.msra.mxu0 0
    %66 = vmatprep.subr.bf16.mxu0 0
    %67 = vmatpush1.bf16.msra.mxu0 0
    %68 = vmatprep.subr.bf16.mxu0 0
    %69 = vmatpush1.bf16.msra.mxu0 0
    %70 = vmatprep.subr.bf16.mxu0 0
    %71 = vmatpush1.bf16.msra.mxu0 0
    %72 = vmatprep.subr.bf16.mxu0 0
    %73 = vmatpush1.bf16.msra.mxu0 0
    %74 = vmatprep.subr.bf16.mxu0 0
    %75 = vmatpush1.bf16.msra.mxu0 0
    %76 = vmatprep.subr.bf16.mxu0 0
    %77 = vmatpush1.bf16.msra.mxu0 0
    %78 = vmatprep.subr.bf16.mxu0 0
    %79 = vmatpush1.bf16.msra.mxu0 0
    %80 = vmatprep.subr.bf16.mxu0 0
    %81 = vmatpush1.bf16.msra.mxu0 0
    %82 = vmatprep.subr.bf16.mxu0 0
    %83 = vmatpush1.bf16.msra.mxu0 0
    %84 = vmatprep.mubr.bf16.mxu0 0
    %85 = vmatmul.mubr.bf16.gmra.mrb[0].mxu0 %v50
    %v86 = vpop.f32.mrb[0].mxu0
    %v87 = vadd.f32 0.0, %v86
    %v88 = vpop.f32.mrb[0].mxu0
    %v89 = vpop.f32.mrb[0].mxu0
    %v90 = vadd.f32 0.0, %v89
    %v91 = vpop.f32.mrb[0].mxu0
    %92 = vdwg.mxu0
    %v93 = vpack.c.bf16 %v90, %v87
    %v94 = vld [vmem:[#allocation2] sm:$0xf]
    %v95 = vld [vmem:[#allocation2 + $0x4] sm:$0xf]
    %v96 = vld [vmem:[#allocation2 + $0x8] sm:$0xf]
    %v97 = vld [vmem:[#allocation2 + $0xc] sm:$0xf]
    %v98 = vld [vmem:[#allocation2 + $0x10] sm:$0xf]
    %v99 = vld [vmem:[#allocation2 + $0x14] sm:$0xf]
    %v100 = vld [vmem:[#allocation2 + $0x18] sm:$0xf]
    %v101 = vld [vmem:[#allocation2 + $0x1c] sm:$0xf]
    %v102 = vld [vmem:[#allocation2 + $0x20] sm:$0xf]
    %v103 = vld [vmem:[#allocation2 + $0x24] sm:$0xf]
    %v104 = vld [vmem:[#allocation2 + $0x28] sm:$0xf]
    %v105 = vld [vmem:[#allocation2 + $0x2c] sm:$0xf]
    %v106 = vld [vmem:[#allocation2 + $0x30] sm:$0xf]
    %v107 = vld [vmem:[#allocation2 + $0x34] sm:$0xf]
    %v108 = vld [vmem:[#allocation2 + $0x38] sm:$0xf]
    %v109 = vld [vmem:[#allocation2 + $0x3c] sm:$0xf]
    %v110 = vld [vmem:[%s3] sm:$0x1]
    %v112 = vlaneseq
    %v113 = vshrl.u32 %v112, 7
    %v114 = vsub.s32 0, %v113
    %v115 = vrot.slane %v110, %v114
    %v133 = vunpack.c.l.b16 %v94
    %v134 = vunpack.c.l.b16 %v95
    %v135 = vunpack.c.l.b16 %v96
    %v136 = vunpack.c.l.b16 %v97
    %v137 = vunpack.c.l.b16 %v98
    %v138 = vunpack.c.l.b16 %v99
    %v139 = vunpack.c.l.b16 %v100
    %v140 = vunpack.c.l.b16 %v101
    %v141 = vunpack.c.l.b16 %v102
    %v142 = vunpack.c.l.b16 %v103
    %v143 = vunpack.c.l.b16 %v104
    %v144 = vunpack.c.l.b16 %v105
    %v145 = vunpack.c.l.b16 %v106
    %v146 = vunpack.c.l.b16 %v107
    %v147 = vunpack.c.l.b16 %v108
    %v148 = vunpack.c.l.b16 %v109
    %v149 = vpack.c.b16 %v134, %v133
    %v150 = vpack.c.b16 %v136, %v135
    %v151 = vpack.c.b16 %v138, %v137
    %v152 = vpack.c.b16 %v140, %v139
    %v153 = vpack.c.b16 %v142, %v141
    %v154 = vpack.c.b16 %v144, %v143
    %v155 = vpack.c.b16 %v146, %v145
    %v156 = vpack.c.b16 %v148, %v147
    %165 = vmatprep.subr.bf16.mxu0 0
    %166 = vmatpush1.bf16.msra.mxu0 %v149
    %167 = vmatprep.subr.bf16.mxu0 0
    %168 = vmatpush1.bf16.msra.mxu0 %v150
    %169 = vmatprep.subr.bf16.mxu0 0
    %170 = vmatpush1.bf16.msra.mxu0 %v151
    %171 = vmatprep.subr.bf16.mxu0 0
    %172 = vmatpush1.bf16.msra.mxu0 %v152
    %173 = vmatprep.subr.bf16.mxu0 0
    %174 = vmatpush1.bf16.msra.mxu0 %v153
    %175 = vmatprep.subr.bf16.mxu0 0
    %176 = vmatpush1.bf16.msra.mxu0 %v154
    %177 = vmatprep.subr.bf16.mxu0 0
    %178 = vmatpush1.bf16.msra.mxu0 %v155
    %179 = vmatprep.subr.bf16.mxu0 0
    %180 = vmatpush1.bf16.msra.mxu0 %v156
    %181 = vmatprep.subr.bf16.mxu0 0
    %182 = vmatpush1.bf16.msra.mxu0 0
    %183 = vmatprep.subr.bf16.mxu0 0
    %184 = vmatpush1.bf16.msra.mxu0 0
    %185 = vmatprep.subr.bf16.mxu0 0
    %186 = vmatpush1.bf16.msra.mxu0 0
    %187 = vmatprep.subr.bf16.mxu0 0
    %188 = vmatpush1.bf16.msra.mxu0 0
    %189 = vmatprep.subr.bf16.mxu0 0
    %190 = vmatpush1.bf16.msra.mxu0 0
    %191 = vmatprep.subr.bf16.mxu0 0
    %192 = vmatpush1.bf16.msra.mxu0 0
    %193 = vmatprep.subr.bf16.mxu0 0
    %194 = vmatpush1.bf16.msra.mxu0 0
    %195 = vmatprep.subr.bf16.mxu0 0
    %196 = vmatpush1.bf16.msra.mxu0 0
    %197 = vmatprep.mubr.bf16.mxu0 0
    %198 = vmatmul.mubr.bf16.gmra.mrb[0].mxu0 %v93
    %v199 = vpop.f32.mrb[0].mxu0
    %v200 = vadd.f32 %v115, %v199
    %v201 = vpop.f32.mrb[0].mxu0
    %v202 = vpop.f32.mrb[0].mxu0
    %v203 = vadd.f32 %v115, %v202
    %v204 = vpop.f32.mrb[0].mxu0
    %205 = vdwg.mxu0
    %v206 = vmax.f32 %v200, 0.0
    %v207 = vmax.f32 %v203, 0.0
    %v208 = vpack.c.bf16 %v207, %v206
    %s209 = scalar_lea.vmem [#allocation2], 64
    %v210 = vld [vmem:[%s209] sm:$0xf]
    %v211 = vld [vmem:[%s209 + $0x4] sm:$0xf]
    %v212 = vld [vmem:[%s209 + $0x8] sm:$0xf]
    %v213 = vld [vmem:[%s209 + $0xc] sm:$0xf]
    %v214 = vld [vmem:[%s209 + $0x10] sm:$0xf]
    %v215 = vld [vmem:[%s209 + $0x14] sm:$0xf]
    %v216 = vld [vmem:[%s209 + $0x18] sm:$0xf]
    %v217 = vld [vmem:[%s209 + $0x1c] sm:$0xf]
    %v218 = vld [vmem:[%s209 + $0x20] sm:$0xf]
    %v219 = vld [vmem:[%s209 + $0x24] sm:$0xf]
    %v220 = vld [vmem:[%s209 + $0x28] sm:$0xf]
    %v221 = vld [vmem:[%s209 + $0x2c] sm:$0xf]
    %v222 = vld [vmem:[%s209 + $0x30] sm:$0xf]
    %v223 = vld [vmem:[%s209 + $0x34] sm:$0xf]
    %v224 = vld [vmem:[%s209 + $0x38] sm:$0xf]
    %v225 = vld [vmem:[%s209 + $0x3c] sm:$0xf]
    %s226 = scalar_lea.vmem %s3, 1
    %v227 = vld [vmem:[%s226] sm:$0x1]
    %v229 = vlaneseq
    %v230 = vshrl.u32 %v229, 7
    %v231 = vsub.s32 0, %v230
    %v232 = vrot.slane %v227, %v231
    %v250 = vunpack.c.l.b16 %v210
    %v251 = vunpack.c.l.b16 %v211
    %v252 = vunpack.c.l.b16 %v212
    %v253 = vunpack.c.l.b16 %v213
    %v254 = vunpack.c.l.b16 %v214
    %v255 = vunpack.c.l.b16 %v215
    %v256 = vunpack.c.l.b16 %v216
    %v257 = vunpack.c.l.b16 %v217
    %v258 = vunpack.c.l.b16 %v218
    %v259 = vunpack.c.l.b16 %v219
    %v260 = vunpack.c.l.b16 %v220
    %v261 = vunpack.c.l.b16 %v221
    %v262 = vunpack.c.l.b16 %v222
    %v263 = vunpack.c.l.b16 %v223
    %v264 = vunpack.c.l.b16 %v224
    %v265 = vunpack.c.l.b16 %v225
    %v266 = vpack.c.b16 %v251, %v250
    %v267 = vpack.c.b16 %v253, %v252
    %v268 = vpack.c.b16 %v255, %v254
    %v269 = vpack.c.b16 %v257, %v256
    %v270 = vpack.c.b16 %v259, %v258
    %v271 = vpack.c.b16 %v261, %v260
    %v272 = vpack.c.b16 %v263, %v262
    %v273 = vpack.c.b16 %v265, %v264
    %282 = vmatprep.subr.bf16.mxu0 0
    %283 = vmatpush1.bf16.msra.mxu0 %v266
    %284 = vmatprep.subr.bf16.mxu0 0
    %285 = vmatpush1.bf16.msra.mxu0 %v267
    %286 = vmatprep.subr.bf16.mxu0 0
    %287 = vmatpush1.bf16.msra.mxu0 %v268
    %288 = vmatprep.subr.bf16.mxu0 0
    %289 = vmatpush1.bf16.msra.mxu0 %v269
    %290 = vmatprep.subr.bf16.mxu0 0
    %291 = vmatpush1.bf16.msra.mxu0 %v270
    %292 = vmatprep.subr.bf16.mxu0 0
    %293 = vmatpush1.bf16.msra.mxu0 %v271
    %294 = vmatprep.subr.bf16.mxu0 0
    %295 = vmatpush1.bf16.msra.mxu0 %v272
    %296 = vmatprep.subr.bf16.mxu0 0
    %297 = vmatpush1.bf16.msra.mxu0 %v273
    %298 = vmatprep.subr.bf16.mxu0 0
    %299 = vmatpush1.bf16.msra.mxu0 0
    %300 = vmatprep.subr.bf16.mxu0 0
    %301 = vmatpush1.bf16.msra.mxu0 0
    %302 = vmatprep.subr.bf16.mxu0 0
    %303 = vmatpush1.bf16.msra.mxu0 0
    %304 = vmatprep.subr.bf16.mxu0 0
    %305 = vmatpush1.bf16.msra.mxu0 0
    %306 = vmatprep.subr.bf16.mxu0 0
    %307 = vmatpush1.bf16.msra.mxu0 0
    %308 = vmatprep.subr.bf16.mxu0 0
    %309 = vmatpush1.bf16.msra.mxu0 0
    %310 = vmatprep.subr.bf16.mxu0 0
    %311 = vmatpush1.bf16.msra.mxu0 0
    %312 = vmatprep.subr.bf16.mxu0 0
    %313 = vmatpush1.bf16.msra.mxu0 0
    %314 = vmatprep.mubr.bf16.mxu0 0
    %315 = vmatmul.mubr.bf16.gmra.mrb[0].mxu0 %v208
    %v316 = vpop.f32.mrb[0].mxu0
    %v317 = vadd.f32 %v232, %v316
    %v318 = vpop.f32.mrb[0].mxu0
    %v319 = vpop.f32.mrb[0].mxu0
    %v320 = vadd.f32 %v232, %v319
    %v321 = vpop.f32.mrb[0].mxu0
    %322 = vdwg.mxu0
    %v323 = vpack.c.bf16 %v320, %v317
    %324 = vmatprep.subr.bf16.mxu0 0
    %325 = vmatpush1.bf16.msra.mxu0 %v323
    %326 = vmatprep.subr.bf16.mxu0 0
    %327 = vmatpush1.bf16.msra.mxu0 0
    %328 = vmatprep.subr.bf16.mxu0 0
    %329 = vmatpush1.bf16.msra.mxu0 0
    %330 = vmatprep.subr.bf16.mxu0 0
    %331 = vmatpush1.bf16.msra.mxu0 0
    %332 = vmatprep.subr.bf16.mxu0 0
    %333 = vmatpush1.bf16.msra.mxu0 0
    %334 = vmatprep.subr.bf16.mxu0 0
    %335 = vmatpush1.bf16.msra.mxu0 0
    %336 = vmatprep.subr.bf16.mxu0 0
    %337 = vmatpush1.bf16.msra.mxu0 0
    %338 = vmatprep.subr.bf16.mxu0 0
    %339 = vmatpush1.bf16.msra.mxu0 0
    %340 = vmatprep.subr.bf16.mxu0 0
    %341 = vmatpush1.bf16.msra.mxu0 0
    %342 = vmatprep.subr.bf16.mxu0 0
    %343 = vmatpush1.bf16.msra.mxu0 0
    %344 = vmatprep.subr.bf16.mxu0 0
    %345 = vmatpush1.bf16.msra.mxu0 0
    %346 = vmatprep.subr.bf16.mxu0 0
    %347 = vmatpush1.bf16.msra.mxu0 0
    %348 = vmatprep.subr.bf16.mxu0 0
    %349 = vmatpush1.bf16.msra.mxu0 0
    %350 = vmatprep.subr.bf16.mxu0 0
    %351 = vmatpush1.bf16.msra.mxu0 0
    %352 = vmatprep.subr.bf16.mxu0 0
    %353 = vmatpush1.bf16.msra.mxu0 0
    %354 = vmatprep.subr.bf16.mxu0 0
    %355 = vmatpush1.bf16.msra.mxu0 0
    %356 = vmatprep.mubr.bf16.mxu0 0
    %357 = vmatmul.mubr.bf16.gmra.mrb[0].mxu0 %v50
    %v358 = vpop.f32.mrb[0].mxu0
    %v359 = vadd.f32 0.0, %v358
    %v360 = vpop.f32.mrb[0].mxu0
    %v361 = vpop.f32.mrb[0].mxu0
    %v362 = vadd.f32 0.0, %v361
    %v363 = vpop.f32.mrb[0].mxu0
    %364 = vdwg.mxu0
    %v365 = vpack.c.bf16 %v362, %v359
    %s366 = scalar_lea.vmem [#allocation2], 128
    %v367 = vld [vmem:[%s366] sm:$0xf]
    %v368 = vld [vmem:[%s366 + $0x4] sm:$0xf]
    %v369 = vld [vmem:[%s366 + $0x8] sm:$0xf]
    %v370 = vld [vmem:[%s366 + $0xc] sm:$0xf]
    %v371 = vld [vmem:[%s366 + $0x10] sm:$0xf]
    %v372 = vld [vmem:[%s366 + $0x14] sm:$0xf]
    %v373 = vld [vmem:[%s366 + $0x18] sm:$0xf]
    %v374 = vld [vmem:[%s366 + $0x1c] sm:$0xf]
    %v375 = vld [vmem:[%s366 + $0x20] sm:$0xf]
    %v376 = vld [vmem:[%s366 + $0x24] sm:$0xf]
    %v377 = vld [vmem:[%s366 + $0x28] sm:$0xf]
    %v378 = vld [vmem:[%s366 + $0x2c] sm:$0xf]
    %v379 = vld [vmem:[%s366 + $0x30] sm:$0xf]
    %v380 = vld [vmem:[%s366 + $0x34] sm:$0xf]
    %v381 = vld [vmem:[%s366 + $0x38] sm:$0xf]
    %v382 = vld [vmem:[%s366 + $0x3c] sm:$0xf]
    %s383 = scalar_lea.vmem %s3, 2
    %v384 = vld [vmem:[%s383] sm:$0x1]
    %v386 = vlaneseq
    %v387 = vshrl.u32 %v386, 7
    %v388 = vsub.s32 0, %v387
    %v389 = vrot.slane %v384, %v388
    %v407 = vunpack.c.l.b16 %v367
    %v408 = vunpack.c.l.b16 %v368
    %v409 = vunpack.c.l.b16 %v369
    %v410 = vunpack.c.l.b16 %v370
    %v411 = vunpack.c.l.b16 %v371
    %v412 = vunpack.c.l.b16 %v372
    %v413 = vunpack.c.l.b16 %v373
    %v414 = vunpack.c.l.b16 %v374
    %v415 = vunpack.c.l.b16 %v375
    %v416 = vunpack.c.l.b16 %v376
    %v417 = vunpack.c.l.b16 %v377
    %v418 = vunpack.c.l.b16 %v378
    %v419 = vunpack.c.l.b16 %v379
    %v420 = vunpack.c.l.b16 %v380
    %v421 = vunpack.c.l.b16 %v381
    %v422 = vunpack.c.l.b16 %v382
    %v423 = vpack.c.b16 %v408, %v407
    %v424 = vpack.c.b16 %v410, %v409
    %v425 = vpack.c.b16 %v412, %v411
    %v426 = vpack.c.b16 %v414, %v413
    %v427 = vpack.c.b16 %v416, %v415
    %v428 = vpack.c.b16 %v418, %v417
    %v429 = vpack.c.b16 %v420, %v419
    %v430 = vpack.c.b16 %v422, %v421
    %439 = vmatprep.subr.bf16.mxu0 0
    %440 = vmatpush1.bf16.msra.mxu0 %v423
    %441 = vmatprep.subr.bf16.mxu0 0
    %442 = vmatpush1.bf16.msra.mxu0 %v424
    %443 = vmatprep.subr.bf16.mxu0 0
    %444 = vmatpush1.bf16.msra.mxu0 %v425
    %445 = vmatprep.subr.bf16.mxu0 0
    %446 = vmatpush1.bf16.msra.mxu0 %v426
    %447 = vmatprep.subr.bf16.mxu0 0
    %448 = vmatpush1.bf16.msra.mxu0 %v427
    %449 = vmatprep.subr.bf16.mxu0 0
    %450 = vmatpush1.bf16.msra.mxu0 %v428
    %451 = vmatprep.subr.bf16.mxu0 0
    %452 = vmatpush1.bf16.msra.mxu0 %v429
    %453 = vmatprep.subr.bf16.mxu0 0
    %454 = vmatpush1.bf16.msra.mxu0 %v430
    %455 = vmatprep.subr.bf16.mxu0 0
    %456 = vmatpush1.bf16.msra.mxu0 0
    %457 = vmatprep.subr.bf16.mxu0 0
    %458 = vmatpush1.bf16.msra.mxu0 0
    %459 = vmatprep.subr.bf16.mxu0 0
    %460 = vmatpush1.bf16.msra.mxu0 0
    %461 = vmatprep.subr.bf16.mxu0 0
    %462 = vmatpush1.bf16.msra.mxu0 0
    %463 = vmatprep.subr.bf16.mxu0 0
    %464 = vmatpush1.bf16.msra.mxu0 0
    %465 = vmatprep.subr.bf16.mxu0 0
    %466 = vmatpush1.bf16.msra.mxu0 0
    %467 = vmatprep.subr.bf16.mxu0 0
    %468 = vmatpush1.bf16.msra.mxu0 0
    %469 = vmatprep.subr.bf16.mxu0 0
    %470 = vmatpush1.bf16.msra.mxu0 0
    %471 = vmatprep.mubr.bf16.mxu0 0
    %472 = vmatmul.mubr.bf16.gmra.mrb[0].mxu0 %v365
    %v473 = vpop.f32.mrb[0].mxu0
    %v474 = vadd.f32 %v389, %v473
    %v475 = vpop.f32.mrb[0].mxu0
    %v476 = vpop.f32.mrb[0].mxu0
    %v477 = vadd.f32 %v389, %v476
    %v478 = vpop.f32.mrb[0].mxu0
    %479 = vdwg.mxu0
    %v480 = vmax.f32 %v474, 0.0
    %v481 = vmax.f32 %v477, 0.0
    %v482 = vpack.c.bf16 %v481, %v480
    %s483 = scalar_lea.vmem [#allocation2], 192
    %v484 = vld [vmem:[%s483] sm:$0xf]
    %v485 = vld [vmem:[%s483 + $0x4] sm:$0xf]
    %v486 = vld [vmem:[%s483 + $0x8] sm:$0xf]
    %v487 = vld [vmem:[%s483 + $0xc] sm:$0xf]
    %v488 = vld [vmem:[%s483 + $0x10] sm:$0xf]
    %v489 = vld [vmem:[%s483 + $0x14] sm:$0xf]
    %v490 = vld [vmem:[%s483 + $0x18] sm:$0xf]
    %v491 = vld [vmem:[%s483 + $0x1c] sm:$0xf]
    %v492 = vld [vmem:[%s483 + $0x20] sm:$0xf]
    %v493 = vld [vmem:[%s483 + $0x24] sm:$0xf]
    %v494 = vld [vmem:[%s483 + $0x28] sm:$0xf]
    %v495 = vld [vmem:[%s483 + $0x2c] sm:$0xf]
    %v496 = vld [vmem:[%s483 + $0x30] sm:$0xf]
    %v497 = vld [vmem:[%s483 + $0x34] sm:$0xf]
    %v498 = vld [vmem:[%s483 + $0x38] sm:$0xf]
    %v499 = vld [vmem:[%s483 + $0x3c] sm:$0xf]
    %s500 = scalar_lea.vmem %s3, 3
    %v501 = vld [vmem:[%s500] sm:$0x1]
    %v503 = vlaneseq
    %v504 = vshrl.u32 %v503, 7
    %v505 = vsub.s32 0, %v504
    %v506 = vrot.slane %v501, %v505
    %v524 = vunpack.c.l.b16 %v484
    %v525 = vunpack.c.l.b16 %v485
    %v526 = vunpack.c.l.b16 %v486
    %v527 = vunpack.c.l.b16 %v487
    %v528 = vunpack.c.l.b16 %v488
    %v529 = vunpack.c.l.b16 %v489
    %v530 = vunpack.c.l.b16 %v490
    %v531 = vunpack.c.l.b16 %v491
    %v532 = vunpack.c.l.b16 %v492
    %v533 = vunpack.c.l.b16 %v493
    %v534 = vunpack.c.l.b16 %v494
    %v535 = vunpack.c.l.b16 %v495
    %v536 = vunpack.c.l.b16 %v496
    %v537 = vunpack.c.l.b16 %v497
    %v538 = vunpack.c.l.b16 %v498
    %v539 = vunpack.c.l.b16 %v499
    %v540 = vpack.c.b16 %v525, %v524
    %v541 = vpack.c.b16 %v527, %v526
    %v542 = vpack.c.b16 %v529, %v528
    %v543 = vpack.c.b16 %v531, %v530
    %v544 = vpack.c.b16 %v533, %v532
    %v545 = vpack.c.b16 %v535, %v534
    %v546 = vpack.c.b16 %v537, %v536
    %v547 = vpack.c.b16 %v539, %v538
    %556 = vmatprep.subr.bf16.mxu0 0
    %557 = vmatpush1.bf16.msra.mxu0 %v540
    %558 = vmatprep.subr.bf16.mxu0 0
    %559 = vmatpush1.bf16.msra.mxu0 %v541
    %560 = vmatprep.subr.bf16.mxu0 0
    %561 = vmatpush1.bf16.msra.mxu0 %v542
    %562 = vmatprep.subr.bf16.mxu0 0
    %563 = vmatpush1.bf16.msra.mxu0 %v543
    %564 = vmatprep.subr.bf16.mxu0 0
    %565 = vmatpush1.bf16.msra.mxu0 %v544
    %566 = vmatprep.subr.bf16.mxu0 0
    %567 = vmatpush1.bf16.msra.mxu0 %v545
    %568 = vmatprep.subr.bf16.mxu0 0
    %569 = vmatpush1.bf16.msra.mxu0 %v546
    %570 = vmatprep.subr.bf16.mxu0 0
    %571 = vmatpush1.bf16.msra.mxu0 %v547
    %572 = vmatprep.subr.bf16.mxu0 0
    %573 = vmatpush1.bf16.msra.mxu0 0
    %574 = vmatprep.subr.bf16.mxu0 0
    %575 = vmatpush1.bf16.msra.mxu0 0
    %576 = vmatprep.subr.bf16.mxu0 0
    %577 = vmatpush1.bf16.msra.mxu0 0
    %578 = vmatprep.subr.bf16.mxu0 0
    %579 = vmatpush1.bf16.msra.mxu0 0
    %580 = vmatprep.subr.bf16.mxu0 0
    %581 = vmatpush1.bf16.msra.mxu0 0
    %582 = vmatprep.subr.bf16.mxu0 0
    %583 = vmatpush1.bf16.msra.mxu0 0
    %584 = vmatprep.subr.bf16.mxu0 0
    %585 = vmatpush1.bf16.msra.mxu0 0
    %586 = vmatprep.subr.bf16.mxu0 0
    %587 = vmatpush1.bf16.msra.mxu0 0
    %588 = vmatprep.mubr.bf16.mxu0 0
    %589 = vmatmul.mubr.bf16.gmra.mrb[0].mxu0 %v482
    %v590 = vpop.f32.mrb[0].mxu0
    %v591 = vadd.f32 %v506, %v590
    %v592 = vpop.f32.mrb[0].mxu0
    %v593 = vpop.f32.mrb[0].mxu0
    %v594 = vadd.f32 %v506, %v593
    %v595 = vpop.f32.mrb[0].mxu0
    %596 = vdwg.mxu0
    %597 = vst [vmem:[#allocation5] sm:$0xff] %v591
    %598 = vst [vmem:[#allocation5 + $0x8] sm:$0xff] %v594
    // Predicated region
    $region22: #{gin_model.1} parent=1 // pred_check
      _
    $region23: #{gin_model.1} parent=1 // pred_check_branch
      %600 = sbr.rel (0) target = $region25
    $region24: #{gin_model.1} parent=1 // pred_region
      %s602 = ssub.s32 256, 256
      %603 = vsyncadd [#allocation4], %s602
      %s604 = sshll.u32 [#allocation5], 4
      %s605 = int_to_ptr.vmem [resolvable:$true] %s604
      %610 = dma.vmem_to_hbm [thread:$0]  %s605, 256, %s4, [#allocation4], 128, 128, 8
    $region25: #{gin_model.1} parent=1 // pred_fallthru
      _
    // Predicated region
    $region26: #{gin_model.1} parent=1 // pred_check
      _
    $region27: #{gin_model.1} parent=1 // pred_check_branch
      %612 = sbr.rel (0) target = $region29
    $region28: #{gin_model.1} parent=1 // pred_region
      %613 = dma.done [#allocation4], 256
    $region29: #{gin_model.1} parent=1 // pred_fallthru
      _
    %614 = vsyncpa [#allocation3], 1
    %615 = vsyncpa [#allocation4], 1

</llo_original>
